<compile_context>
chip_gen: v6e
topology: v6e:2x2x1
jax: 0.10.0
libtpu: 0.0.40
codegen_flags: <defaults>
</compile_context>

<pallas_src>
import jax
import jax.numpy as jnp
from jax.experimental import pallas as pl
from jax.experimental.pallas import tpu as pltpu


DIM_LIST = [126, 32, 1]   # same as the PyTorch module default
TM_MAX = 8192             # rows per grid tile; multiple of 1024 so tm//128 % 8 == 0


def _round_up(a, b):
    return (a + b - 1) // b * b


def actor_kernel(x_ref, w1_ref, b1_ref, w2_ref, b2_ref, o_ref):
    # Layer 0: Linear(126 -> 32) + ReLU.  MXU matmul with f32 accumulation.
    h = jnp.dot(x_ref[...], w1_ref[...], preferred_element_type=jnp.float32)
    h = jnp.maximum(h + b1_ref[...], 0.0)                      # bias + ReLU on VPU
    # Layer 1: Linear(32 -> 1) on the VPU/XLU (broadcast-mul + lane reduce)
    # instead of a near-empty (tm,32)@(32,1) MXU pass.
    o = jnp.sum(h * w2_ref[...], axis=-1, keepdims=True) + b2_ref[...]   # (tm, 1)
    # Lane-dense store: (tm, 1) -> (tm//128, 128).  The relayout is XLU work
    # hidden under the x-stream DMA; the store becomes unmasked and contiguous.
    o_ref[...] = o.reshape(o_ref.shape).astype(o_ref.dtype)


def actor_forward(x, params, *, tile_rows=TM_MAX):
    """x: (batch, n, 126) float32 -> (batch, n) float32.

    NOTE: for tiny M (< ~1-2K rows) a plain jnp forward (XLA fusion) is
    cheaper than the pallas_call launch; the kernel pays off when streaming
    large candidate batches.
    """
    w1, b1, w2, b2 = params
    B, N, D = x.shape
    assert D == DIM_LIST[0]
    assert tile_rows > 0 and tile_rows % 1024 == 0, "tile_rows must be a multiple of 1024"

    M = B * N
    M_pad = _round_up(M, 128)          # output slab is (M_pad // 128, 128)
    x2d = x.reshape(M, D)

    if M_pad <= tile_rows:
        # Single block: make the x block equal the (row-padded) array dims.
        # The pad copy is tiny on this path (<= tile_rows rows).
        tm = M_pad
        if M_pad != M:
            x2d = jnp.pad(x2d, ((0, M_pad - M), (0, 0)))
        grid = (1,)
    else:
        # Streamed path: x keeps its M rows; the final x block is a masked
        # partial read and the final slab block a masked partial write.  Rows
        # in [M, M_pad) may hold garbage in the slab and are sliced off below.
        tm = tile_rows
        grid = (pl.cdiv(M_pad, tm),)

    w2_row = w2.reshape(1, DIM_LIST[1])   # (32, 1) -> (1, 32) for the VPU layer

    out = pl.pallas_call(
        actor_kernel,
        out_shape=jax.ShapeDtypeStruct((M_pad // 128, 128), jnp.float32),
        grid_spec=pltpu.PrefetchScalarGridSpec(
            num_scalar_prefetch=0,
            grid=grid,
            in_specs=[
                pl.BlockSpec((tm, D), lambda i: (i, 0)),                      # x tile (streamed)
                pl.BlockSpec((D, DIM_LIST[1]), lambda i: (0, 0)),             # w1 (resident)
                pl.BlockSpec((1, DIM_LIST[1]), lambda i: (0, 0)),             # b1
                pl.BlockSpec((1, DIM_LIST[1]), lambda i: (0, 0)),             # w2 (as row)
                pl.BlockSpec((1, 1), lambda i: (0, 0)),                       # b2
            ],
            # Lane-dense output block; tm//128 is a multiple of 8 (or the full
            # slab extent on the single-block path).
            out_specs=pl.BlockSpec((tm // 128, 128), lambda i: (i, 0)),
        ),
        compiler_params=pltpu.CompilerParams(
            dimension_semantics=("parallel",),          # row tiles are independent
            vmem_limit_bytes=32 * 1024 * 1024,          # ~8.1 MiB actually used
        ),
    )(x2d, w1, b1, w2_row, b2)

    # Slab -> flat rows -> (B, N); padded tail rows are discarded here.
    return out.reshape(M_pad)[:M].reshape(B, N)


def init_params(key, dim_list=DIM_LIST):
    """Deterministic init mimicking nn.Linear's default uniform(-1/sqrt(fan_in), ...)."""
    params = []
    for i in range(len(dim_list) - 1):
        fan_in, fan_out = dim_list[i], dim_list[i + 1]
        key, kw, kb = jax.random.split(key, 3)
        bound = 1.0 / jnp.sqrt(fan_in)
        # stored (in_features, out_features) so the kernel does x @ W
        w = jax.random.uniform(kw, (fan_in, fan_out), jnp.float32, -bound, bound)
        b = jax.random.uniform(kb, (1, fan_out), jnp.float32, -bound, bound)
        params.extend([w, b])
    return tuple(params)


def reference_forward(x, params):
    """Pure-JAX reference (true-f32 matmuls) for the correctness check."""
    w1, b1, w2, b2 = params
    hp = jax.lax.Precision.HIGHEST
    h = jnp.maximum(jnp.dot(x, w1, precision=hp) + b1, 0.0)
    o = jnp.dot(h, w2, precision=hp) + b2
    return jnp.squeeze(o, axis=-1)


if __name__ == "__main__":
    key = jax.random.PRNGKey(0)
    kx, kp, kx2 = jax.random.split(key, 3)
    params = init_params(kp)

    # Tolerance note: the kernel's layer-0 matmul runs on the MXU, where f32
    # matmuls lower to bf16 multi-pass; the reference is pinned to
    # Precision.HIGHEST.  5e-3 comfortably covers any bf16-pass rounding while
    # still catching structural/indexing bugs (which are O(0.1+)).
    TOL = dict(atol=5e-3, rtol=5e-3)

    # Small case consistent with the module: (batch=2, candidates=8, features=126)
    # -> single padded block, masked tail rows.
    x = jax.random.normal(kx, (2, 8, DIM_LIST[0]), dtype=jnp.float32)
    out = jax.block_until_ready(actor_forward(x, params))
    ref = reference_forward(x, params)
    assert out.shape == (2, 8), out.shape
    assert jnp.allclose(out, ref, **TOL), float(jnp.max(jnp.abs(out - ref)))

    # Multi-tile case exercising a partial final x block (masked read) and a
    # partial final slab block (masked write): M = 2100, tm = 1024, grid = 3.
    x2 = jax.random.normal(kx2, (3, 700, DIM_LIST[0]), dtype=jnp.float32)
    out2 = jax.block_until_ready(actor_forward(x2, params, tile_rows=1024))
    ref2 = reference_forward(x2, params)
    assert out2.shape == (3, 700), out2.shape
    assert jnp.allclose(out2, ref2, **TOL), float(jnp.max(jnp.abs(out2 - ref2)))

    print("KERNEL_OK")
</pallas_src>

<mosaic_0001>
module attributes {stable_mosaic.version = 11 : i64} {
  func.func @actor_kernel(%arg0: i32, %arg1: memref<128x126xf32, #tpu.memory_space<vmem>>, %arg2: memref<126x32xf32, #tpu.memory_space<vmem>>, %arg3: memref<1x32xf32, #tpu.memory_space<vmem>>, %arg4: memref<1x32xf32, #tpu.memory_space<vmem>>, %arg5: memref<1x1xf32, #tpu.memory_space<vmem>>, %arg6: memref<1x128xf32, #tpu.memory_space<vmem>>) attributes {dimension_semantics = [#tpu.dimension_semantics<parallel>], iteration_bounds = array<i64: 1>, scalar_prefetch = 0 : i64, scratch_operands = 0 : i64, tpu.core_type = #tpu.core_type<tc>, window_params = [{transform_indices = @transform_0, window_bounds = array<i64: 128, 126>}, {pipeline_mode = #tpu.pipeline_mode<synchronous>, transform_indices = @transform_1, window_bounds = array<i64: 126, 32>}, {pipeline_mode = #tpu.pipeline_mode<synchronous>, transform_indices = @transform_2, window_bounds = array<i64: 1, 32>}, {pipeline_mode = #tpu.pipeline_mode<synchronous>, transform_indices = @transform_3, window_bounds = array<i64: 1, 32>}, {pipeline_mode = #tpu.pipeline_mode<synchronous>, transform_indices = @transform_4, window_bounds = array<i64: 1, 1>}, {transform_indices = @transform_5, window_bounds = array<i64: 1, 128>}]} {
    %c0 = arith.constant 0 : index
    %c0_0 = arith.constant 0 : index
    %0 = vector.load %arg1[%c0, %c0_0] : memref<128x126xf32, #tpu.memory_space<vmem>>, vector<128x126xf32>
    %c0_1 = arith.constant 0 : index
    %c0_2 = arith.constant 0 : index
    %1 = vector.load %arg2[%c0_1, %c0_2] : memref<126x32xf32, #tpu.memory_space<vmem>>, vector<126x32xf32>
    %cst = arith.constant dense<0.000000e+00> : vector<128x32xf32>
    %2 = tpu.matmul %0, %1, %cst {dimension_numbers = #tpu.dot_dimension_numbers<[1], [0], [0], [1], [0, 0, 1, 1], [], []>} : vector<128x126xf32>, vector<126x32xf32>, vector<128x32xf32> -> vector<128x32xf32>
    %c0_3 = arith.constant 0 : index
    %c0_4 = arith.constant 0 : index
    %3 = vector.load %arg3[%c0_3, %c0_4] : memref<1x32xf32, #tpu.memory_space<vmem>>, vector<1x32xf32>
    %4 = vector.broadcast %3 : vector<1x32xf32> to vector<128x32xf32>
    %5 = arith.addf %2, %4 : vector<128x32xf32>
    %cst_5 = arith.constant 0.000000e+00 : f32
    %6 = vector.broadcast %cst_5 : f32 to vector<128x32xf32>
    %7 = arith.maximumf %5, %6 : vector<128x32xf32>
    %c0_6 = arith.constant 0 : index
    %c0_7 = arith.constant 0 : index
    %8 = vector.load %arg4[%c0_6, %c0_7] : memref<1x32xf32, #tpu.memory_space<vmem>>, vector<1x32xf32>
    %9 = vector.broadcast %8 : vector<1x32xf32> to vector<128x32xf32>
    %10 = arith.mulf %7, %9 : vector<128x32xf32>
    %cst_8 = arith.constant dense<0.000000e+00> : vector<128xf32>
    %11 = vector.multi_reduction <add>, %10, %cst_8 [1] : vector<128x32xf32> to vector<128xf32>
    %12 = vector.shape_cast %11 : vector<128xf32> to vector<128x1xf32>
    %c0_9 = arith.constant 0 : index
    %c0_10 = arith.constant 0 : index
    %13 = vector.load %arg5[%c0_9, %c0_10] : memref<1x1xf32, #tpu.memory_space<vmem>>, vector<1x1xf32>
    %14 = vector.broadcast %13 : vector<1x1xf32> to vector<128x1xf32>
    %15 = arith.addf %12, %14 : vector<128x1xf32>
    %16 = vector.shape_cast %15 : vector<128x1xf32> to vector<1x128xf32>
    %c0_11 = arith.constant 0 : index
    %c0_12 = arith.constant 0 : index
    %17 = vector.load %arg6[%c0_11, %c0_12] : memref<1x128xf32, #tpu.memory_space<vmem>>, vector<1x128xf32>
    tpu.vector_store %arg6[%c0_11, %c0_12], %16 {strides = array<i32>} : memref<1x128xf32, #tpu.memory_space<vmem>>, vector<1x128xf32>,
    return
  }
  func.func @transform_0(%arg0: i32) -> (i32, i32) {
    %c0_i32 = arith.constant 0 : i32
    %c0_i32_0 = arith.constant 0 : i32
    return %arg0, %c0_i32 : i32, i32
  }
  func.func @transform_1(%arg0: i32) -> (i32, i32) {
    %c0_i32 = arith.constant 0 : i32
    %c0_i32_0 = arith.constant 0 : i32
    %c0_i32_1 = arith.constant 0 : i32
    return %c0_i32, %c0_i32_0 : i32, i32
  }
  func.func @transform_2(%arg0: i32) -> (i32, i32) {
    %c0_i32 = arith.constant 0 : i32
    %c0_i32_0 = arith.constant 0 : i32
    %c0_i32_1 = arith.constant 0 : i32
    return %c0_i32, %c0_i32_0 : i32, i32
  }
  func.func @transform_3(%arg0: i32) -> (i32, i32) {
    %c0_i32 = arith.constant 0 : i32
    %c0_i32_0 = arith.constant 0 : i32
    %c0_i32_1 = arith.constant 0 : i32
    return %c0_i32, %c0_i32_0 : i32, i32
  }
  func.func @transform_4(%arg0: i32) -> (i32, i32) {
    %c0_i32 = arith.constant 0 : i32
    %c0_i32_0 = arith.constant 0 : i32
    %c0_i32_1 = arith.constant 0 : i32
    return %c0_i32, %c0_i32_0 : i32, i32
  }
  func.func @transform_5(%arg0: i32) -> (i32, i32) {
    %c0_i32 = arith.constant 0 : i32
    %c0_i32_0 = arith.constant 0 : i32
    return %arg0, %c0_i32 : i32, i32
  }
}

</mosaic_0001>

<llo_original>
// kernel: tpu_custom_call.1
$region0: #{tpu_custom_call.1}
  #allocation0 [shape = 'u32[]', space=smem, size = 0x4, offset = 0x4, fixed_abs, tag = 'smem constant byte address 0x4 - core index']
  #allocation1 [shape = 'u32[144,128]{1,0:T(1,128)}', space=vmem, size = 0x12000, scoped, tag = 'internal scratch']
  #allocation2 [shape = 'f32[1,1]{1,0:T(1,128)S(1)}', space=vmem, size = 0x200, scoped, tag = 'scoped memory for tpu_custom_call.1']
  %s0 = inlined_call_operand.vmem [shape: f32[128,126], index: 0, kind: input, shape index: {}]
  %s1 = inlined_call_operand.vmem [shape: f32[126,32], index: 1, kind: input, shape index: {}]
  %s2 = inlined_call_operand.vmem [shape: f32[1,32], index: 2, kind: input, shape index: {}]
  %s3 = inlined_call_operand.vmem [shape: f32[1,32], index: 3, kind: input, shape index: {}]
  %s4 = inlined_call_operand.<no memory space> [shape: f32[1,1], index: 4, kind: input, shape index: {}]
  %s5 = inlined_call_operand.hbm [shape: f32[1,128], index: 5, kind: output, shape index: {}]
  %s6 = sld [smem:[#allocation0]]
  $region30: #{tpu_custom_call.1} parent=0
    _
  %s8 = ssub.s32 1, %s6
  %s9 = scalar_select 0, %s8, %s6
  %v10 = vstv %s4
  %11 = vst [vmem:[#allocation2] sm:$0x1] %v10
  $region1: #{tpu_custom_call.1} parent=0
    #allocation3 [shape = 'u8[512]{0}', space=vmem, size = 0x400, scoped, tag = 'output window, operand 0, single buffered']
    #allocation4 [shape = 's32[1]{0}', space=sflag, size = 0x4, scoped, tag = 'scoped memory for tpu_custom_call.1']
    %12 = vsyncpa [#allocation4], 0
    // Predicated region
    $region2: #{tpu_custom_call.1} parent=1 // pred_check
      _
    $region3: #{tpu_custom_call.1} parent=1 // pred_check_branch
      %14 = sbr.rel (0) target = $region5
    $region4: #{tpu_custom_call.1} parent=1 // pred_region
      _
    $region5: #{tpu_custom_call.1} parent=1 // pred_fallthru
      _
    // Predicated region
    $region6: #{tpu_custom_call.1} parent=1 // pred_check
      _
    $region7: #{tpu_custom_call.1} parent=1 // pred_check_branch
      %16 = sbr.rel (0) target = $region9
    $region8: #{tpu_custom_call.1} parent=1 // pred_region
      _
    $region9: #{tpu_custom_call.1} parent=1 // pred_fallthru
      _
    // Predicated region
    $region10: #{tpu_custom_call.1} parent=1 // pred_check
      _
    $region11: #{tpu_custom_call.1} parent=1 // pred_check_branch
      %18 = sbr.rel (0) target = $region13
    $region12: #{tpu_custom_call.1} parent=1 // pred_region
      _
    $region13: #{tpu_custom_call.1} parent=1 // pred_fallthru
      _
    // Predicated region
    $region14: #{tpu_custom_call.1} parent=1 // pred_check
      _
    $region15: #{tpu_custom_call.1} parent=1 // pred_check_branch
      %20 = sbr.rel (0) target = $region17
    $region16: #{tpu_custom_call.1} parent=1 // pred_region
      _
    $region17: #{tpu_custom_call.1} parent=1 // pred_fallthru
      _
    // Predicated region
    $region18: #{tpu_custom_call.1} parent=1 // pred_check
      _
    $region19: #{tpu_custom_call.1} parent=1 // pred_check_branch
      %22 = sbr.rel (0) target = $region21
    $region20: #{tpu_custom_call.1} parent=1 // pred_region
      _
    $region21: #{tpu_custom_call.1} parent=1 // pred_fallthru
      _
    %v23 = vld [vmem:[%s0] sm:$0xff]
    %v24 = vld [vmem:[%s0 + $0x8] sm:$0xff]
    %v25 = vld [vmem:[%s0 + $0x10] sm:$0xff]
    %v26 = vld [vmem:[%s0 + $0x18] sm:$0xff]
    %v27 = vld [vmem:[%s0 + $0x20] sm:$0xff]
    %v28 = vld [vmem:[%s0 + $0x28] sm:$0xff]
    %v29 = vld [vmem:[%s0 + $0x30] sm:$0xff]
    %v30 = vld [vmem:[%s0 + $0x38] sm:$0xff]
    %v31 = vld [vmem:[%s0 + $0x40] sm:$0xff]
    %v32 = vld [vmem:[%s0 + $0x48] sm:$0xff]
    %v33 = vld [vmem:[%s0 + $0x50] sm:$0xff]
    %v34 = vld [vmem:[%s0 + $0x58] sm:$0xff]
    %v35 = vld [vmem:[%s0 + $0x60] sm:$0xff]
    %v36 = vld [vmem:[%s0 + $0x68] sm:$0xff]
    %v37 = vld [vmem:[%s0 + $0x70] sm:$0xff]
    %v38 = vld [vmem:[%s0 + $0x78] sm:$0xff]
    %v39 = vld [vmem:[%s1] sm:$0xff]
    %v40 = vld [vmem:[%s1 + $0x8] sm:$0xff]
    %v41 = vld [vmem:[%s1 + $0x10] sm:$0xff]
    %v42 = vld [vmem:[%s1 + $0x18] sm:$0xff]
    %v43 = vld [vmem:[%s1 + $0x20] sm:$0xff]
    %v44 = vld [vmem:[%s1 + $0x28] sm:$0xff]
    %v45 = vld [vmem:[%s1 + $0x30] sm:$0xff]
    %v46 = vld [vmem:[%s1 + $0x38] sm:$0xff]
    %v47 = vld [vmem:[%s1 + $0x40] sm:$0xff]
    %v48 = vld [vmem:[%s1 + $0x48] sm:$0xff]
    %v49 = vld [vmem:[%s1 + $0x50] sm:$0xff]
    %v50 = vld [vmem:[%s1 + $0x58] sm:$0xff]
    %v51 = vld [vmem:[%s1 + $0x60] sm:$0xff]
    %v52 = vld [vmem:[%s1 + $0x68] sm:$0xff]
    %v53 = vld [vmem:[%s1 + $0x70] sm:$0xff]
    %v54 = vld [vmem:[%s1 + $0x78] sm:$0x3f]
    %v55 = vld [vmem:[%s2] sm:$0x1]
    %v57 = vlaneseq
    %v58 = vshrl.u32 %v57, 7
    %v59 = vsub.s32 0, %v58
    %v60 = vrot.slane %v55, %v59
    %vm62 = vcmask 1031168
    %v64 = vsel %vm62, %v23, 0
    %v67 = vsel %vm62, %v24, 0
    %v70 = vsel %vm62, %v25, 0
    %v73 = vsel %vm62, %v26, 0
    %v76 = vsel %vm62, %v27, 0
    %v79 = vsel %vm62, %v28, 0
    %v82 = vsel %vm62, %v29, 0
    %v85 = vsel %vm62, %v30, 0
    %v88 = vsel %vm62, %v31, 0
    %v91 = vsel %vm62, %v32, 0
    %v94 = vsel %vm62, %v33, 0
    %v97 = vsel %vm62, %v34, 0
    %v100 = vsel %vm62, %v35, 0
    %v103 = vsel %vm62, %v36, 0
    %v106 = vsel %vm62, %v37, 0
    %v109 = vsel %vm62, %v38, 0
    %vm111 = vcmask 1045504
    %v113 = vsel %vm111, %v54, 0
    %115 = vmatprep.subr.mxu0 0.0
    %116 = vmatpush1.msra.mxu0 %v113
    %117 = vmatprep.subr.mxu0 0.0
    %118 = vmatpush1.msra.mxu0 %v53
    %119 = vmatprep.subr.mxu0 0.0
    %120 = vmatpush1.msra.mxu0 %v52
    %121 = vmatprep.subr.mxu0 0.0
    %122 = vmatpush1.msra.mxu0 %v51
    %123 = vmatprep.subr.mxu0 0.0
    %124 = vmatpush1.msra.mxu0 %v50
    %125 = vmatprep.subr.mxu0 0.0
    %126 = vmatpush1.msra.mxu0 %v49
    %127 = vmatprep.subr.mxu0 0.0
    %128 = vmatpush1.msra.mxu0 %v48
    %129 = vmatprep.subr.mxu0 0.0
    %130 = vmatpush1.msra.mxu0 %v47
    %131 = vmatprep.subr.mxu0 0.0
    %132 = vmatpush1.msra.mxu0 %v46
    %133 = vmatprep.subr.mxu0 0.0
    %134 = vmatpush1.msra.mxu0 %v45
    %135 = vmatprep.subr.mxu0 0.0
    %136 = vmatpush1.msra.mxu0 %v44
    %137 = vmatprep.subr.mxu0 0.0
    %138 = vmatpush1.msra.mxu0 %v43
    %139 = vmatprep.subr.mxu0 0.0
    %140 = vmatpush1.msra.mxu0 %v42
    %141 = vmatprep.subr.mxu0 0.0
    %142 = vmatpush1.msra.mxu0 %v41
    %143 = vmatprep.subr.mxu0 0.0
    %144 = vmatpush1.msra.mxu0 %v40
    %145 = vmatprep.subr.mxu0 0.0
    %146 = vmatpush1.msra.mxu0 %v39
    %147 = vmatprep.subr.mxu0 0.0
    %148 = vmatpush2.msra.mxu0 0.0
    %149 = vmatprep.subr.mxu0 0.0
    %150 = vmatpush2.msra.mxu0 0.0
    %151 = vmatprep.subr.mxu0 0.0
    %152 = vmatpush2.msra.mxu0 0.0
    %153 = vmatprep.subr.mxu0 0.0
    %154 = vmatpush2.msra.mxu0 0.0
    %155 = vmatprep.subr.mxu0 0.0
    %156 = vmatpush2.msra.mxu0 0.0
    %157 = vmatprep.subr.mxu0 0.0
    %158 = vmatpush2.msra.mxu0 0.0
    %159 = vmatprep.subr.mxu0 0.0
    %160 = vmatpush2.msra.mxu0 0.0
    %161 = vmatprep.subr.mxu0 0.0
    %162 = vmatpush2.msra.mxu0 0.0
    %163 = vmatprep.subr.mxu0 0.0
    %164 = vmatpush2.msra.mxu0 0.0
    %165 = vmatprep.subr.mxu0 0.0
    %166 = vmatpush2.msra.mxu0 0.0
    %167 = vmatprep.subr.mxu0 0.0
    %168 = vmatpush2.msra.mxu0 0.0
    %169 = vmatprep.subr.mxu0 0.0
    %170 = vmatpush2.msra.mxu0 0.0
    %171 = vmatprep.subr.mxu0 0.0
    %172 = vmatpush2.msra.mxu0 0.0
    %173 = vmatprep.subr.mxu0 0.0
    %174 = vmatpush2.msra.mxu0 0.0
    %175 = vmatprep.subr.mxu0 0.0
    %176 = vmatpush2.msra.mxu0 0.0
    %177 = vmatprep.subr.mxu0 0.0
    %178 = vmatpush2.msra.mxu0 0.0
    %179 = vmatprep.mubr.f32.mxu0 0.0
    %180 = vmatmul.mubr.f32.gmra.mxu0 %v64
    %v181 = vpop.f32.mrf.mxu0
    %v182 = vadd.f32 %v60, %v181
    %v183 = vpop.f32.mrf.mxu0
    %184 = vmatprep.mubr.f32.mxu0 0.0
    %185 = vmatmul.mubr.f32.gmra.mxu0 %v67
    %v186 = vpop.f32.mrf.mxu0
    %v187 = vadd.f32 %v60, %v186
    %v188 = vpop.f32.mrf.mxu0
    %189 = vmatprep.mubr.f32.mxu0 0.0
    %190 = vmatmul.mubr.f32.gmra.mxu0 %v70
    %v191 = vpop.f32.mrf.mxu0
    %v192 = vadd.f32 %v60, %v191
    %v193 = vpop.f32.mrf.mxu0
    %194 = vmatprep.mubr.f32.mxu0 0.0
    %195 = vmatmul.mubr.f32.gmra.mxu0 %v73
    %v196 = vpop.f32.mrf.mxu0
    %v197 = vadd.f32 %v60, %v196
    %v198 = vpop.f32.mrf.mxu0
    %199 = vmatprep.mubr.f32.mxu0 0.0
    %200 = vmatmul.mubr.f32.gmra.mxu0 %v76
    %v201 = vpop.f32.mrf.mxu0
    %v202 = vadd.f32 %v60, %v201
    %v203 = vpop.f32.mrf.mxu0
    %204 = vmatprep.mubr.f32.mxu0 0.0
    %205 = vmatmul.mubr.f32.gmra.mxu0 %v79
    %v206 = vpop.f32.mrf.mxu0
    %v207 = vadd.f32 %v60, %v206
    %v208 = vpop.f32.mrf.mxu0
    %209 = vmatprep.mubr.f32.mxu0 0.0
    %210 = vmatmul.mubr.f32.gmra.mxu0 %v82
    %v211 = vpop.f32.mrf.mxu0
    %v212 = vadd.f32 %v60, %v211
    %v213 = vpop.f32.mrf.mxu0
    %214 = vmatprep.mubr.f32.mxu0 0.0
    %215 = vmatmul.mubr.f32.gmra.mxu0 %v85
    %v216 = vpop.f32.mrf.mxu0
    %v217 = vadd.f32 %v60, %v216
    %v218 = vpop.f32.mrf.mxu0
    %219 = vmatprep.mubr.f32.mxu0 0.0
    %220 = vmatmul.mubr.f32.gmra.mxu0 %v88
    %v221 = vpop.f32.mrf.mxu0
    %v222 = vadd.f32 %v60, %v221
    %v223 = vpop.f32.mrf.mxu0
    %224 = vmatprep.mubr.f32.mxu0 0.0
    %225 = vmatmul.mubr.f32.gmra.mxu0 %v91
    %v226 = vpop.f32.mrf.mxu0
    %v227 = vadd.f32 %v60, %v226
    %v228 = vpop.f32.mrf.mxu0
    %229 = vmatprep.mubr.f32.mxu0 0.0
    %230 = vmatmul.mubr.f32.gmra.mxu0 %v94
    %v231 = vpop.f32.mrf.mxu0
    %v232 = vadd.f32 %v60, %v231
    %v233 = vpop.f32.mrf.mxu0
    %234 = vmatprep.mubr.f32.mxu0 0.0
    %235 = vmatmul.mubr.f32.gmra.mxu0 %v97
    %v236 = vpop.f32.mrf.mxu0
    %v237 = vadd.f32 %v60, %v236
    %v238 = vpop.f32.mrf.mxu0
    %239 = vmatprep.mubr.f32.mxu0 0.0
    %240 = vmatmul.mubr.f32.gmra.mxu0 %v100
    %v241 = vpop.f32.mrf.mxu0
    %v242 = vadd.f32 %v60, %v241
    %v243 = vpop.f32.mrf.mxu0
    %244 = vmatprep.mubr.f32.mxu0 0.0
    %245 = vmatmul.mubr.f32.gmra.mxu0 %v103
    %v246 = vpop.f32.mrf.mxu0
    %v247 = vadd.f32 %v60, %v246
    %v248 = vpop.f32.mrf.mxu0
    %249 = vmatprep.mubr.f32.mxu0 0.0
    %250 = vmatmul.mubr.f32.gmra.mxu0 %v106
    %v251 = vpop.f32.mrf.mxu0
    %v252 = vadd.f32 %v60, %v251
    %v253 = vpop.f32.mrf.mxu0
    %254 = vmatprep.mubr.f32.mxu0 0.0
    %255 = vmatmul.mubr.f32.gmra.mxu0 %v109
    %v256 = vpop.f32.mrf.mxu0
    %v257 = vadd.f32 %v60, %v256
    %v258 = vpop.f32.mrf.mxu0
    %259 = vdwg.mxu0
    %v260 = vmax.f32 %v182, 0.0
    %v261 = vmax.f32 %v187, 0.0
    %v262 = vmax.f32 %v192, 0.0
    %v263 = vmax.f32 %v197, 0.0
    %v264 = vmax.f32 %v202, 0.0
    %v265 = vmax.f32 %v207, 0.0
    %v266 = vmax.f32 %v212, 0.0
    %v267 = vmax.f32 %v217, 0.0
    %v268 = vmax.f32 %v222, 0.0
    %v269 = vmax.f32 %v227, 0.0
    %v270 = vmax.f32 %v232, 0.0
    %v271 = vmax.f32 %v237, 0.0
    %v272 = vmax.f32 %v242, 0.0
    %v273 = vmax.f32 %v247, 0.0
    %v274 = vmax.f32 %v252, 0.0
    %v275 = vmax.f32 %v257, 0.0
    %v276 = vld [vmem:[%s3] sm:$0x1]
    %v278 = vlaneseq
    %v279 = vshrl.u32 %v278, 7
    %v280 = vsub.s32 0, %v279
    %v281 = vrot.slane %v276, %v280
    %v283 = vmul.f32 %v260, %v281
    %v284 = vmul.f32 %v261, %v281
    %v285 = vmul.f32 %v262, %v281
    %v286 = vmul.f32 %v263, %v281
    %v287 = vmul.f32 %v264, %v281
    %v288 = vmul.f32 %v265, %v281
    %v289 = vmul.f32 %v266, %v281
    %v290 = vmul.f32 %v267, %v281
    %v291 = vmul.f32 %v268, %v281
    %v292 = vmul.f32 %v269, %v281
    %v293 = vmul.f32 %v270, %v281
    %v294 = vmul.f32 %v271, %v281
    %v295 = vmul.f32 %v272, %v281
    %v296 = vmul.f32 %v273, %v281
    %v297 = vmul.f32 %v274, %v281
    %v298 = vmul.f32 %v275, %v281
    %vm299 = vcmask 261120
    %v300 = vsel %vm299, %v283, 0.0
    %301 = vadd.xlane.f32.xlu0 %v300
    %v302 = vpop.xlane.xlu0 %301
    %v303 = vsel %vm299, %v284, 0.0
    %304 = vadd.xlane.f32.xlu0 %v303
    %v305 = vpop.xlane.xlu0 %304
    %v306 = vsel %vm299, %v285, 0.0
    %307 = vadd.xlane.f32.xlu0 %v306
    %v308 = vpop.xlane.xlu0 %307
    %v309 = vsel %vm299, %v286, 0.0
    %310 = vadd.xlane.f32.xlu0 %v309
    %v311 = vpop.xlane.xlu0 %310
    %v312 = vsel %vm299, %v287, 0.0
    %313 = vadd.xlane.f32.xlu0 %v312
    %v314 = vpop.xlane.xlu0 %313
    %v315 = vsel %vm299, %v288, 0.0
    %316 = vadd.xlane.f32.xlu0 %v315
    %v317 = vpop.xlane.xlu0 %316
    %v318 = vsel %vm299, %v289, 0.0
    %319 = vadd.xlane.f32.xlu0 %v318
    %v320 = vpop.xlane.xlu0 %319
    %v321 = vsel %vm299, %v290, 0.0
    %322 = vadd.xlane.f32.xlu0 %v321
    %v323 = vpop.xlane.xlu0 %322
    %v324 = vsel %vm299, %v291, 0.0
    %325 = vadd.xlane.f32.xlu0 %v324
    %v326 = vpop.xlane.xlu0 %325
    %v327 = vsel %vm299, %v292, 0.0
    %328 = vadd.xlane.f32.xlu0 %v327
    %v329 = vpop.xlane.xlu0 %328
    %v330 = vsel %vm299, %v293, 0.0
    %331 = vadd.xlane.f32.xlu0 %v330
    %v332 = vpop.xlane.xlu0 %331
    %v333 = vsel %vm299, %v294, 0.0
    %334 = vadd.xlane.f32.xlu0 %v333
    %v335 = vpop.xlane.xlu0 %334
    %v336 = vsel %vm299, %v295, 0.0
    %337 = vadd.xlane.f32.xlu0 %v336
    %v338 = vpop.xlane.xlu0 %337
    %v339 = vsel %vm299, %v296, 0.0
    %340 = vadd.xlane.f32.xlu0 %v339
    %v341 = vpop.xlane.xlu0 %340
    %v342 = vsel %vm299, %v297, 0.0
    %343 = vadd.xlane.f32.xlu0 %v342
    %v344 = vpop.xlane.xlu0 %343
    %v345 = vsel %vm299, %v298, 0.0
    %346 = vadd.xlane.f32.xlu0 %v345
    %v347 = vpop.xlane.xlu0 %346
    %v348 = vld [vmem:[#allocation2] sm:$0x1]
    %v350 = vlaneseq
    %v351 = vshrl.u32 %v350, 7
    %v352 = vsub.s32 0, %v351
    %v353 = vrot.slane %v348, %v352
    %v355 = vadd.f32 %v302, %v353
    %v356 = vadd.f32 %v305, %v353
    %v357 = vadd.f32 %v308, %v353
    %v358 = vadd.f32 %v311, %v353
    %v359 = vadd.f32 %v314, %v353
    %v360 = vadd.f32 %v317, %v353
    %v361 = vadd.f32 %v320, %v353
    %v362 = vadd.f32 %v323, %v353
    %v363 = vadd.f32 %v326, %v353
    %v364 = vadd.f32 %v329, %v353
    %v365 = vadd.f32 %v332, %v353
    %v366 = vadd.f32 %v335, %v353
    %v367 = vadd.f32 %v338, %v353
    %v368 = vadd.f32 %v341, %v353
    %v369 = vadd.f32 %v344, %v353
    %v370 = vadd.f32 %v347, %v353
    %387 = vset.pattern.permute.xlu0 0
    %388 = vperm.xlu0 %387, %v355
    %v389 = vpop.permute.xlu0 %388
    %390 = vset.pattern.permute.xlu0 0
    %391 = vperm.xlu0 %390, %v356
    %v392 = vpop.permute.xlu0 %391
    %393 = vset.pattern.permute.xlu0 0
    %394 = vperm.xlu0 %393, %v357
    %v395 = vpop.permute.xlu0 %394
    %396 = vset.pattern.permute.xlu0 0
    %397 = vperm.xlu0 %396, %v358
    %v398 = vpop.permute.xlu0 %397
    %399 = vset.pattern.permute.xlu0 0
    %400 = vperm.xlu0 %399, %v359
    %v401 = vpop.permute.xlu0 %400
    %402 = vset.pattern.permute.xlu0 0
    %403 = vperm.xlu0 %402, %v360
    %v404 = vpop.permute.xlu0 %403
    %405 = vset.pattern.permute.xlu0 0
    %406 = vperm.xlu0 %405, %v361
    %v407 = vpop.permute.xlu0 %406
    %408 = vset.pattern.permute.xlu0 0
    %409 = vperm.xlu0 %408, %v362
    %v410 = vpop.permute.xlu0 %409
    %411 = vset.pattern.permute.xlu0 0
    %412 = vperm.xlu0 %411, %v363
    %v413 = vpop.permute.xlu0 %412
    %414 = vset.pattern.permute.xlu0 0
    %415 = vperm.xlu0 %414, %v364
    %v416 = vpop.permute.xlu0 %415
    %417 = vset.pattern.permute.xlu0 0
    %418 = vperm.xlu0 %417, %v365
    %v419 = vpop.permute.xlu0 %418
    %420 = vset.pattern.permute.xlu0 0
    %421 = vperm.xlu0 %420, %v366
    %v422 = vpop.permute.xlu0 %421
    %423 = vset.pattern.permute.xlu0 0
    %424 = vperm.xlu0 %423, %v367
    %v425 = vpop.permute.xlu0 %424
    %426 = vset.pattern.permute.xlu0 0
    %427 = vperm.xlu0 %426, %v368
    %v428 = vpop.permute.xlu0 %427
    %429 = vset.pattern.permute.xlu0 0
    %430 = vperm.xlu0 %429, %v369
    %v431 = vpop.permute.xlu0 %430
    %432 = vset.pattern.permute.xlu0 0
    %433 = vperm.xlu0 %432, %v370
    %v434 = vpop.permute.xlu0 %433
    %v435 = vlaneseq
    %v436 = vand.u32 %v435, 127
    %v437 = vlaneseq
    %v438 = vshrl.u32 %v437, 7
    %v439 = vsub.s32 %v436, %v438
    %v440 = vrot.slane %v389, %v439
    %v441 = vadd.s32 %v436, 4294967288
    %v442 = vlaneseq
    %v443 = vshrl.u32 %v442, 7
    %v444 = vsub.s32 %v441, %v443
    %v445 = vrot.slane %v392, %v444
    %vm446 = vcmask 130112
    %v447 = vsel %vm446, %v445, %v440
    %v448 = vadd.s32 %v436, 4294967280
    %v449 = vlaneseq
    %v450 = vshrl.u32 %v449, 7
    %v451 = vsub.s32 %v448, %v450
    %v452 = vrot.slane %v395, %v451
    %vm453 = vcmask 195712
    %v454 = vsel %vm453, %v452, %v447
    %v455 = vadd.s32 %v436, 4294967272
    %v456 = vlaneseq
    %v457 = vshrl.u32 %v456, 7
    %v458 = vsub.s32 %v455, %v457
    %v459 = vrot.slane %v398, %v458
    %vm460 = vcmask 261312
    %v461 = vsel %vm460, %v459, %v454
    %v462 = vadd.s32 %v436, 4294967264
    %v463 = vlaneseq
    %v464 = vshrl.u32 %v463, 7
    %v465 = vsub.s32 %v462, %v464
    %v466 = vrot.slane %v401, %v465
    %vm467 = vcmask 326912
    %v468 = vsel %vm467, %v466, %v461
    %v469 = vadd.s32 %v436, 4294967256
    %v470 = vlaneseq
    %v471 = vshrl.u32 %v470, 7
    %v472 = vsub.s32 %v469, %v471
    %v473 = vrot.slane %v404, %v472
    %vm474 = vcmask 392512
    %v475 = vsel %vm474, %v473, %v468
    %v476 = vadd.s32 %v436, 4294967248
    %v477 = vlaneseq
    %v478 = vshrl.u32 %v477, 7
    %v479 = vsub.s32 %v476, %v478
    %v480 = vrot.slane %v407, %v479
    %vm481 = vcmask 458112
    %v482 = vsel %vm481, %v480, %v475
    %v483 = vadd.s32 %v436, 4294967240
    %v484 = vlaneseq
    %v485 = vshrl.u32 %v484, 7
    %v486 = vsub.s32 %v483, %v485
    %v487 = vrot.slane %v410, %v486
    %vm488 = vcmask 523712
    %v489 = vsel %vm488, %v487, %v482
    %v490 = vadd.s32 %v436, 4294967232
    %v491 = vlaneseq
    %v492 = vshrl.u32 %v491, 7
    %v493 = vsub.s32 %v490, %v492
    %v494 = vrot.slane %v413, %v493
    %vm495 = vcmask 589312
    %v496 = vsel %vm495, %v494, %v489
    %v497 = vadd.s32 %v436, 4294967224
    %v498 = vlaneseq
    %v499 = vshrl.u32 %v498, 7
    %v500 = vsub.s32 %v497, %v499
    %v501 = vrot.slane %v416, %v500
    %vm502 = vcmask 654912
    %v503 = vsel %vm502, %v501, %v496
    %v504 = vadd.s32 %v436, 4294967216
    %v505 = vlaneseq
    %v506 = vshrl.u32 %v505, 7
    %v507 = vsub.s32 %v504, %v506
    %v508 = vrot.slane %v419, %v507
    %vm509 = vcmask 720512
    %v510 = vsel %vm509, %v508, %v503
    %v511 = vadd.s32 %v436, 4294967208
    %v512 = vlaneseq
    %v513 = vshrl.u32 %v512, 7
    %v514 = vsub.s32 %v511, %v513
    %v515 = vrot.slane %v422, %v514
    %vm516 = vcmask 786112
    %v517 = vsel %vm516, %v515, %v510
    %v518 = vadd.s32 %v436, 4294967200
    %v519 = vlaneseq
    %v520 = vshrl.u32 %v519, 7
    %v521 = vsub.s32 %v518, %v520
    %v522 = vrot.slane %v425, %v521
    %vm523 = vcmask 851712
    %v524 = vsel %vm523, %v522, %v517
    %v525 = vadd.s32 %v436, 4294967192
    %v526 = vlaneseq
    %v527 = vshrl.u32 %v526, 7
    %v528 = vsub.s32 %v525, %v527
    %v529 = vrot.slane %v428, %v528
    %vm530 = vcmask 917312
    %v531 = vsel %vm530, %v529, %v524
    %v532 = vadd.s32 %v436, 4294967184
    %v533 = vlaneseq
    %v534 = vshrl.u32 %v533, 7
    %v535 = vsub.s32 %v532, %v534
    %v536 = vrot.slane %v431, %v535
    %vm537 = vcmask 982912
    %v538 = vsel %vm537, %v536, %v531
    %v539 = vadd.s32 %v436, 4294967176
    %v540 = vlaneseq
    %v541 = vshrl.u32 %v540, 7
    %v542 = vsub.s32 %v539, %v541
    %v543 = vrot.slane %v434, %v542
    %vm544 = vcmask 1048512
    %v545 = vsel %vm544, %v543, %v538
    %547 = vst [vmem:[#allocation3] sm:$0x1] %v545
    // Predicated region
    $region22: #{tpu_custom_call.1} parent=1 // pred_check
      _
    $region23: #{tpu_custom_call.1} parent=1 // pred_check_branch
      %549 = sbr.rel (0) target = $region25
    $region24: #{tpu_custom_call.1} parent=1 // pred_region
      %s551 = ssub.s32 16, 16
      %552 = vsyncadd [#allocation4], %s551
      %s554 = sshll.u32 [#allocation3], 4
      %s555 = int_to_ptr.vmem [resolvable:$true] %s554
      %557 = dma.vmem_to_hbm [thread:$0]  %s555, 16, %s5, [#allocation4]
    $region25: #{tpu_custom_call.1} parent=1 // pred_fallthru
      _
    // Predicated region
    $region26: #{tpu_custom_call.1} parent=1 // pred_check
      _
    $region27: #{tpu_custom_call.1} parent=1 // pred_check_branch
      %559 = sbr.rel (0) target = $region29
    $region28: #{tpu_custom_call.1} parent=1 // pred_region
      %560 = dma.done [#allocation4], 16
    $region29: #{tpu_custom_call.1} parent=1 // pred_fallthru
      _
    %561 = vsyncpa [#allocation4], 1

</llo_original>
